<compile_context>
chip_gen: v7x
topology: tpu7x:2x2x1
jax: 0.10.0
libtpu: 0.0.40
codegen_flags: <defaults>
</compile_context>

<pallas_src>
import functools

import jax
import jax.numpy as jnp
from jax import lax
from jax.experimental import pallas as pl
from jax.experimental.pallas import tpu as pltpu


_TARGET_TILE_BYTES = 8 << 20   # ~8 MiB/step: per-step overhead <5% on v7x HBM
_VMEM_MARGIN = 2 << 20         # headroom for Mosaic internal scratch / temps


# --------------------------------------------------------------------------
# Kernels
# --------------------------------------------------------------------------
def _excite_gate(pooled_f32, w1_ref, b1_ref, w2_ref, b2_ref):
    """(Bt, C) f32 pooled means -> (Bt, C) f32 h_sigmoid gate.

    The matmuls are tiny and fully hidden under the tile DMA.  Weights are fed
    to the MXU in their native dtype (bf16 weights stay bf16, f32 accumulate);
    no explicit upcast of the operands.
    """
    w1 = w1_ref[...]                                              # (Cr, C)
    w2 = w2_ref[...]                                              # (C, Cr)
    mm_dtype = w1.dtype
    y = pooled_f32 if mm_dtype == jnp.float32 else pooled_f32.astype(mm_dtype)
    h = lax.dot_general(y, w1, (((1,), (1,)), ((), ())),
                        preferred_element_type=jnp.float32)       # (Bt, Cr)
    h = jnp.maximum(h + b1_ref[...].astype(jnp.float32), 0.0)     # ReLU
    if mm_dtype != jnp.float32:
        h = h.astype(mm_dtype)
    s = lax.dot_general(h, w2, (((1,), (1,)), ((), ())),
                        preferred_element_type=jnp.float32)       # (Bt, C)
    s = s + b2_ref[...].astype(jnp.float32)
    return jnp.clip(s + 3.0, 0.0, 6.0) * (1.0 / 6.0)              # h_sigmoid


def _se_kernel_hw_lanes(x_ref, w1_ref, b1_ref, w2_ref, b2_ref, o_ref, *, hw_recip):
    # Block: (Bt, C, HW), spatial on lanes (HW % 128 == 0 path).
    x = x_ref[...]
    # Cross-lane sum (XLU) with f32 accumulation; multiply by a compile-time
    # reciprocal instead of dividing.  No explicit full-tile f32 copy.
    y = jnp.sum(x, axis=-1, dtype=jnp.float32) * hw_recip         # (Bt, C)
    gate = _excite_gate(y, w1_ref, b1_ref, w2_ref, b2_ref).astype(x.dtype)
    o_ref[...] = x * gate[:, :, None]


def _se_kernel_c_lanes(x_ref, w1_ref, b1_ref, w2_ref, b2_ref, o_ref, *, hw_recip):
    # Block: (Bt, HW, C), channels on lanes (lane-dense when HW % 128 != 0).
    x = x_ref[...]
    y = jnp.sum(x, axis=1, dtype=jnp.float32) * hw_recip          # (Bt, C)
    gate = _excite_gate(y, w1_ref, b1_ref, w2_ref, b2_ref).astype(x.dtype)
    o_ref[...] = x * gate[:, None, :]        # cheap sublane broadcast over HW


def _pool_kernel(x_ref, o_ref, *, hw_total, hw_chunk, hw_recip):
    # x block: (1, C, hw_chunk); o block: (1, C, 1) f32.  The output index_map
    # is constant along the HW-chunk grid axis, so it stays resident and is
    # accumulated across that (last, "arbitrary") axis.
    @pl.when(pl.program_id(1) == 0)
    def _():
        o_ref[...] = jnp.zeros_like(o_ref)

    x = x_ref[...]
    if hw_total % hw_chunk != 0:
        # Mask the ragged tail of the last chunk (reads past HW are unspecified
        # and would corrupt the running sum).
        pos = pl.program_id(1) * hw_chunk + lax.broadcasted_iota(jnp.int32, x.shape, 2)
        x = jnp.where(pos < hw_total, x, jnp.zeros_like(x))
    o_ref[...] += jnp.sum(x, axis=-1, keepdims=True, dtype=jnp.float32) * hw_recip


def _scale_kernel(x_ref, g_ref, o_ref):
    # (1, C, hw_chunk) * (1, C, 1) broadcast multiply.
    o_ref[...] = x_ref[...] * g_ref[...]


# --------------------------------------------------------------------------
# Hardware-aware sizing helpers
# --------------------------------------------------------------------------
def _vmem_cap_bytes():
    """Generation-aware scoped-VMEM ceiling (leave ~25% headroom):
    v7x (64 MiB physical) -> 48 MiB; v5e/v6e (128 MiB) -> 96 MiB."""
    try:
        phys = int(pltpu.get_tpu_info().vmem_capacity_bytes)
    except Exception:
        phys = 64 << 20                    # be conservative (v7x) if query fails
    return max(16 << 20, (3 * phys) // 4)


def _tensorcore_count():
    """TensorCores that share a 'parallel' grid axis (2 on v7x / megacore)."""
    try:
        kind = jax.devices()[0].device_kind.lower()
    except Exception:
        return 1
    return 2 if any(t in kind for t in ("v7", "v5p", "v4")) else 1


# --------------------------------------------------------------------------
# Wrappers
# --------------------------------------------------------------------------
def _se_fused(x3, w1, b1, w2, b2, *, channels_last, vmem_cap, tc_count):
    """Single-pass fused SE.  x3: (B, HW, C) if channels_last else (B, C, HW)."""
    B = x3.shape[0]
    inner = x3.shape[1:]
    C = inner[1] if channels_last else inner[0]
    HW = inner[0] if channels_last else inner[1]
    Cr = w1.shape[0]
    per_elem = C * HW * x3.dtype.itemsize
    weight_bytes = sum(int(a.size) * a.dtype.itemsize for a in (w1, b1, w2, b2))

    # Batch tile: ~8 MiB target, capped so 2x(in)+2x(out) double buffers plus
    # (double-buffered) weights fit this generation's VMEM budget.
    bt = max(1, _TARGET_TILE_BYTES // per_elem)
    bt = min(bt, max(1, (vmem_cap - 2 * weight_bytes - _VMEM_MARGIN) // (4 * per_elem)))
    bt = int(min(bt, B))
    # Keep the grid a multiple of the TC count on 2-TC chips (balanced megacore
    # sharding); no forced extra grid steps on 1-TC chips.
    if tc_count > 1:
        while bt > 1 and pl.cdiv(B, bt) % tc_count != 0:
            bt -= 1
    grid = pl.cdiv(B, bt)   # ragged last block OK: padded rows -> garbage gate,
                            # their stores are clipped at the array bounds.

    vmem_limit = int(min(max(4 * bt * per_elem + 2 * weight_bytes + _VMEM_MARGIN,
                             16 << 20), vmem_cap))

    kern = _se_kernel_c_lanes if channels_last else _se_kernel_hw_lanes
    kern = functools.partial(kern, hw_recip=1.0 / HW)
    block = (bt,) + inner

    # TODO(synk): mark the 4 constant weight/bias specs single-buffered
    # (pipeline_mode=pl.Buffered(1)) once verified to lower for top-level
    # pallas_call grids; the VMEM budget above already charges 2x weights.
    return pl.pallas_call(
        kern,
        out_shape=jax.ShapeDtypeStruct(x3.shape, x3.dtype),
        grid_spec=pltpu.PrefetchScalarGridSpec(
            num_scalar_prefetch=0,
            grid=(grid,),
            in_specs=[
                pl.BlockSpec(block, lambda i: (i, 0, 0)),
                pl.BlockSpec((Cr, C), lambda i: (0, 0)),
                pl.BlockSpec((1, Cr), lambda i: (0, 0)),
                pl.BlockSpec((C, Cr), lambda i: (0, 0)),
                pl.BlockSpec((1, C), lambda i: (0, 0)),
            ],
            out_specs=pl.BlockSpec(block, lambda i: (i, 0, 0)),
        ),
        compiler_params=pltpu.CompilerParams(
            dimension_semantics=("parallel",),
            vmem_limit_bytes=vmem_limit,
        ),
    )(x3, w1, b1.reshape(1, Cr), w2, b2.reshape(1, C))


def _se_two_phase(x3, w1, b1, w2, b2, *, vmem_cap):
    """Fallback when a single (C, HW) slab does not fit VMEM: x is read twice
    (pool pass + scale pass), tiled over (batch, HW chunks)."""
    B, C, HW = x3.shape
    itemsize = x3.dtype.itemsize

    if HW <= 128:
        hw_chunk = HW
    else:
        hw_chunk = max(128, (_TARGET_TILE_BYTES // (C * itemsize)) // 128 * 128)
        hw_chunk = min(hw_chunk,
                       max(128, ((vmem_cap - _VMEM_MARGIN) // (4 * C * itemsize))
                           // 128 * 128))
        hw_chunk = min(hw_chunk, (HW // 128) * 128)   # lane-aligned, <= HW
    n_hw = pl.cdiv(HW, hw_chunk)
    tile_bytes = C * hw_chunk * itemsize
    vmem_limit = int(min(max(4 * tile_bytes + _VMEM_MARGIN, 16 << 20), vmem_cap))

    # Phase 1: per-channel pooled mean, accumulated over HW chunks.
    pooled = pl.pallas_call(
        functools.partial(_pool_kernel, hw_total=HW, hw_chunk=hw_chunk,
                          hw_recip=1.0 / HW),
        out_shape=jax.ShapeDtypeStruct((B, C, 1), jnp.float32),
        grid_spec=pltpu.PrefetchScalarGridSpec(
            num_scalar_prefetch=0,
            grid=(B, n_hw),
            in_specs=[pl.BlockSpec((1, C, hw_chunk), lambda b, h: (b, 0, h))],
            out_specs=pl.BlockSpec((1, C, 1), lambda b, h: (b, 0, 0)),
        ),
        compiler_params=pltpu.CompilerParams(
            dimension_semantics=("parallel", "arbitrary"),
            vmem_limit_bytes=vmem_limit,
        ),
    )(x3)

    # Tiny excitation MLP + h_sigmoid in plain JAX (negligible vs the HBM passes).
    y = pooled[:, :, 0]                                           # (B, C) f32
    h = jnp.maximum(y @ w1.T.astype(jnp.float32) + b1.astype(jnp.float32), 0.0)
    s = h @ w2.T.astype(jnp.float32) + b2.astype(jnp.float32)
    gate = (jnp.clip(s + 3.0, 0.0, 6.0) * (1.0 / 6.0)).astype(x3.dtype)
    gate = gate.reshape(B, C, 1)

    # Phase 2: broadcast scale, tiled the same way.
    return pl.pallas_call(
        _scale_kernel,
        out_shape=jax.ShapeDtypeStruct((B, C, HW), x3.dtype),
        grid_spec=pltpu.PrefetchScalarGridSpec(
            num_scalar_prefetch=0,
            grid=(B, n_hw),
            in_specs=[pl.BlockSpec((1, C, hw_chunk), lambda b, h: (b, 0, h)),
                      pl.BlockSpec((1, C, 1), lambda b, h: (b, 0, 0))],
            out_specs=pl.BlockSpec((1, C, hw_chunk), lambda b, h: (b, 0, h)),
        ),
        compiler_params=pltpu.CompilerParams(
            dimension_semantics=("parallel", "parallel"),
            vmem_limit_bytes=vmem_limit,
        ),
    )(x3, gate)


def se_layer(x_nchw, w1, b1, w2, b2, *, force_two_phase=False):
    """SELayer forward.  x_nchw: (B, C, H, W); weights in PyTorch Linear
    layout: w1 (C//r, C), b1 (C//r,), w2 (C, C//r), b2 (C,)."""
    B, C, H, W = x_nchw.shape
    HW = H * W
    per_elem = C * HW * x_nchw.dtype.itemsize
    weight_bytes = sum(int(a.size) * a.dtype.itemsize for a in (w1, b1, w2, b2))

    vmem_cap = _vmem_cap_bytes()
    tc_count = _tensorcore_count()

    fused_fits = (4 * per_elem + 2 * weight_bytes + _VMEM_MARGIN) <= vmem_cap
    if fused_fits and not force_two_phase:
        # Lane-dense layout choice: spatial on lanes when HW is 128-aligned,
        # otherwise channels on lanes (common 7x7 / 14x14 SE blocks).
        channels_last = (HW % 128 != 0) and (C >= 128)
        if channels_last:
            # TODO(synk): in a full network the producing op should emit NHWC
            # directly so this wrapper transpose (one extra HBM pass) vanishes.
            x3 = jnp.transpose(x_nchw.reshape(B, C, HW), (0, 2, 1))
        else:
            x3 = x_nchw.reshape(B, C, HW)
        out = _se_fused(x3, w1, b1, w2, b2, channels_last=channels_last,
                        vmem_cap=vmem_cap, tc_count=tc_count)
        if channels_last:
            out = jnp.transpose(out, (0, 2, 1))
        return out.reshape(B, C, H, W)

    out = _se_two_phase(x_nchw.reshape(B, C, HW), w1, b1, w2, b2,
                        vmem_cap=vmem_cap)
    return out.reshape(B, C, H, W)


# --------------------------------------------------------------------------
# Reference, init, tests
# --------------------------------------------------------------------------
def se_layer_ref(x, w1, b1, w2, b2):
    """Pure-JAX reference of the PyTorch forward."""
    y = jnp.mean(x.astype(jnp.float32), axis=(2, 3))                # (B, C)
    y = jnp.maximum(y @ w1.astype(jnp.float32).T + b1.astype(jnp.float32), 0.0)
    y = y @ w2.astype(jnp.float32).T + b2.astype(jnp.float32)
    y = jnp.clip(y + 3.0, 0.0, 6.0) / 6.0
    return x * y[:, :, None, None].astype(x.dtype)


def init_params(key, channel, reduction=4, dtype=jnp.float32):
    cr = channel // reduction
    k1, k2, k3, k4 = jax.random.split(key, 4)
    # PyTorch Linear default init: U(-1/sqrt(fan_in), 1/sqrt(fan_in))
    bound1 = 1.0 / (channel ** 0.5)
    bound2 = 1.0 / (cr ** 0.5)
    w1 = jax.random.uniform(k1, (cr, channel), dtype, -bound1, bound1)
    b1 = jax.random.uniform(k2, (cr,), dtype, -bound1, bound1)
    w2 = jax.random.uniform(k3, (channel, cr), dtype, -bound2, bound2)
    b2 = jax.random.uniform(k4, (channel,), dtype, -bound2, bound2)
    return w1, b1, w2, b2


if __name__ == "__main__":
    key = jax.random.PRNGKey(0)
    kx1, kx2, kx3, kx4, kp1, kp2 = jax.random.split(key, 6)

    def check(out, ref, name):
        assert out.shape == ref.shape, name
        # TPU f32 matmuls run at DEFAULT (bf16-operand) precision in both the
        # kernel and the reference, so allow a small numerical tolerance; any
        # real bug (wrong gate / broadcast) produces O(0.1-1) errors.
        assert jnp.allclose(out, ref, atol=2e-3, rtol=2e-3), f"mismatch: {name}"

    # 1) channels=8, reduction=4 (hidden=2): fused, spatial-on-lanes path.
    B, C, H, W = 2, 8, 16, 16
    x = jax.random.normal(kx1, (B, C, H, W), dtype=jnp.float32)
    params = init_params(kp1, C, reduction=4)
    out = jax.block_until_ready(se_layer(x, *params))
    check(out, se_layer_ref(x, *params), "fused B=2")

    # 2) larger batch: exercises batch tiling (and a ragged last block on
    #    2-TC chips where the grid is rounded to a multiple of the TC count).
    x2 = jax.random.normal(kx2, (8, C, H, W), dtype=jnp.float32)
    out2 = jax.block_until_ready(se_layer(x2, *params))
    check(out2, se_layer_ref(x2, *params), "fused B=8")

    # 3) 7x7 feature map with C=128: fused, channels-on-lanes (lane-dense) path.
    C3 = 128
    x3 = jax.random.normal(kx3, (2, C3, 7, 7), dtype=jnp.float32)
    params3 = init_params(kp2, C3, reduction=4)
    out3 = jax.block_until_ready(se_layer(x3, *params3))
    check(out3, se_layer_ref(x3, *params3), "fused channels-on-lanes")

    # 4) force the two-phase fallback (pool kernel with a ragged HW chunk +
    #    scale kernel), the path used when a (C, HW) slab exceeds VMEM.
    x4 = jax.random.normal(kx4, (2, C, 16, 20), dtype=jnp.float32)
    out4 = jax.block_until_ready(se_layer(x4, *params, force_two_phase=True))
    check(out4, se_layer_ref(x4, *params), "two-phase fallback")

    print("KERNEL_OK")
</pallas_src>

<mosaic_0001>
module attributes {stable_mosaic.version = 11 : i64} {
  func.func @_se_kernel_hw_lanes(%arg0: i32, %arg1: memref<2x8x256xf32, #tpu.memory_space<vmem>>, %arg2: memref<2x8xf32, #tpu.memory_space<vmem>>, %arg3: memref<1x2xf32, #tpu.memory_space<vmem>>, %arg4: memref<8x2xf32, #tpu.memory_space<vmem>>, %arg5: memref<1x8xf32, #tpu.memory_space<vmem>>, %arg6: memref<2x8x256xf32, #tpu.memory_space<vmem>>) attributes {dimension_semantics = [#tpu.dimension_semantics<parallel>], iteration_bounds = array<i64: 1>, scalar_prefetch = 0 : i64, scratch_operands = 0 : i64, tpu.core_type = #tpu.core_type<tc>, window_params = [{transform_indices = @transform_0, window_bounds = array<i64: 2, 8, 256>}, {pipeline_mode = #tpu.pipeline_mode<synchronous>, transform_indices = @transform_1, window_bounds = array<i64: 2, 8>}, {pipeline_mode = #tpu.pipeline_mode<synchronous>, transform_indices = @transform_2, window_bounds = array<i64: 1, 2>}, {pipeline_mode = #tpu.pipeline_mode<synchronous>, transform_indices = @transform_3, window_bounds = array<i64: 8, 2>}, {pipeline_mode = #tpu.pipeline_mode<synchronous>, transform_indices = @transform_4, window_bounds = array<i64: 1, 8>}, {transform_indices = @transform_5, window_bounds = array<i64: 2, 8, 256>}]} {
    %c0 = arith.constant 0 : index
    %c0_0 = arith.constant 0 : index
    %c0_1 = arith.constant 0 : index
    %0 = vector.load %arg1[%c0, %c0_0, %c0_1] : memref<2x8x256xf32, #tpu.memory_space<vmem>>, vector<2x8x256xf32>
    %cst = arith.constant dense<0.000000e+00> : vector<2x8xf32>
    %1 = vector.multi_reduction <add>, %0, %cst [2] : vector<2x8x256xf32> to vector<2x8xf32>
    %cst_2 = arith.constant 3.906250e-03 : f32
    %2 = vector.broadcast %cst_2 : f32 to vector<2x8xf32>
    %3 = arith.mulf %1, %2 : vector<2x8xf32>
    %c0_3 = arith.constant 0 : index
    %c0_4 = arith.constant 0 : index
    %4 = vector.load %arg2[%c0_3, %c0_4] : memref<2x8xf32, #tpu.memory_space<vmem>>, vector<2x8xf32>
    %c0_5 = arith.constant 0 : index
    %c0_6 = arith.constant 0 : index
    %5 = vector.load %arg4[%c0_5, %c0_6] : memref<8x2xf32, #tpu.memory_space<vmem>>, vector<8x2xf32>
    %cst_7 = arith.constant dense<0.000000e+00> : vector<2x2xf32>
    %6 = tpu.matmul %3, %4, %cst_7 {dimension_numbers = #tpu.dot_dimension_numbers<[1], [1], [0], [0], [0, 0, 1, 0], [], []>} : vector<2x8xf32>, vector<2x8xf32>, vector<2x2xf32> -> vector<2x2xf32>
    %c0_8 = arith.constant 0 : index
    %c0_9 = arith.constant 0 : index
    %7 = vector.load %arg3[%c0_8, %c0_9] : memref<1x2xf32, #tpu.memory_space<vmem>>, vector<1x2xf32>
    %8 = vector.broadcast %7 : vector<1x2xf32> to vector<2x2xf32>
    %9 = arith.addf %6, %8 : vector<2x2xf32>
    %cst_10 = arith.constant 0.000000e+00 : f32
    %10 = vector.broadcast %cst_10 : f32 to vector<2x2xf32>
    %11 = arith.maximumf %9, %10 : vector<2x2xf32>
    %cst_11 = arith.constant dense<0.000000e+00> : vector<2x8xf32>
    %12 = tpu.matmul %11, %5, %cst_11 {dimension_numbers = #tpu.dot_dimension_numbers<[1], [1], [0], [0], [0, 0, 1, 0], [], []>} : vector<2x2xf32>, vector<8x2xf32>, vector<2x8xf32> -> vector<2x8xf32>
    %c0_12 = arith.constant 0 : index
    %c0_13 = arith.constant 0 : index
    %13 = vector.load %arg5[%c0_12, %c0_13] : memref<1x8xf32, #tpu.memory_space<vmem>>, vector<1x8xf32>
    %14 = vector.broadcast %13 : vector<1x8xf32> to vector<2x8xf32>
    %15 = arith.addf %12, %14 : vector<2x8xf32>
    %cst_14 = arith.constant 3.000000e+00 : f32
    %16 = vector.broadcast %cst_14 : f32 to vector<2x8xf32>
    %17 = arith.addf %15, %16 : vector<2x8xf32>
    %cst_15 = arith.constant 0.000000e+00 : f32
    %cst_16 = arith.constant 6.000000e+00 : f32
    %18 = vector.broadcast %cst_15 : f32 to vector<2x8xf32>
    %19 = arith.maximumf %18, %17 : vector<2x8xf32>
    %20 = vector.broadcast %cst_16 : f32 to vector<2x8xf32>
    %21 = arith.minimumf %20, %19 : vector<2x8xf32>
    %cst_17 = arith.constant 0.166666672 : f32
    %22 = vector.broadcast %cst_17 : f32 to vector<2x8xf32>
    %23 = arith.mulf %21, %22 : vector<2x8xf32>
    %24 = vector.shape_cast %23 : vector<2x8xf32> to vector<2x8x1xf32>
    %25 = vector.broadcast %24 : vector<2x8x1xf32> to vector<2x8x256xf32>
    %26 = arith.mulf %0, %25 : vector<2x8x256xf32>
    %c0_18 = arith.constant 0 : index
    %c0_19 = arith.constant 0 : index
    %c0_20 = arith.constant 0 : index
    %27 = vector.load %arg6[%c0_18, %c0_19, %c0_20] : memref<2x8x256xf32, #tpu.memory_space<vmem>>, vector<2x8x256xf32>
    tpu.vector_store %arg6[%c0_18, %c0_19, %c0_20], %26 {strides = array<i32>} : memref<2x8x256xf32, #tpu.memory_space<vmem>>, vector<2x8x256xf32>,
    return
  }
  func.func @transform_0(%arg0: i32) -> (i32, i32, i32) {
    %c0_i32 = arith.constant 0 : i32
    %c0_i32_0 = arith.constant 0 : i32
    %c0_i32_1 = arith.constant 0 : i32
    return %arg0, %c0_i32, %c0_i32_0 : i32, i32, i32
  }
  func.func @transform_1(%arg0: i32) -> (i32, i32) {
    %c0_i32 = arith.constant 0 : i32
    %c0_i32_0 = arith.constant 0 : i32
    %c0_i32_1 = arith.constant 0 : i32
    return %c0_i32, %c0_i32_0 : i32, i32
  }
  func.func @transform_2(%arg0: i32) -> (i32, i32) {
    %c0_i32 = arith.constant 0 : i32
    %c0_i32_0 = arith.constant 0 : i32
    %c0_i32_1 = arith.constant 0 : i32
    return %c0_i32, %c0_i32_0 : i32, i32
  }
  func.func @transform_3(%arg0: i32) -> (i32, i32) {
    %c0_i32 = arith.constant 0 : i32
    %c0_i32_0 = arith.constant 0 : i32
    %c0_i32_1 = arith.constant 0 : i32
    return %c0_i32, %c0_i32_0 : i32, i32
  }
  func.func @transform_4(%arg0: i32) -> (i32, i32) {
    %c0_i32 = arith.constant 0 : i32
    %c0_i32_0 = arith.constant 0 : i32
    %c0_i32_1 = arith.constant 0 : i32
    return %c0_i32, %c0_i32_0 : i32, i32
  }
  func.func @transform_5(%arg0: i32) -> (i32, i32, i32) {
    %c0_i32 = arith.constant 0 : i32
    %c0_i32_0 = arith.constant 0 : i32
    %c0_i32_1 = arith.constant 0 : i32
    return %arg0, %c0_i32, %c0_i32_0 : i32, i32, i32
  }
}

</mosaic_0001>

<llo_original>
// kernel: tpu_custom_call.1
$region0: #{tpu_custom_call.1}
  #allocation0 [shape = 'u32[]', space=smem, size = 0x4, offset = 0x4, fixed_abs, tag = 'smem constant byte address 0x4 - core index']
  #allocation1 [shape = 'u32[144,128]{1,0:T(1,128)}', space=vmem, size = 0x12000, scoped, tag = 'internal scratch']
  %s0 = inlined_call_operand.hbm [shape: f32[2,8,256], index: 0, kind: input, shape index: {}]
  %s1 = inlined_call_operand.vmem [shape: f32[2,8], index: 1, kind: input, shape index: {}]
  %s2 = inlined_call_operand.vmem [shape: f32[1,2], index: 2, kind: input, shape index: {}]
  %s3 = inlined_call_operand.vmem [shape: f32[8,2], index: 3, kind: input, shape index: {}]
  %s4 = inlined_call_operand.vmem [shape: f32[1,8], index: 4, kind: input, shape index: {}]
  %s5 = inlined_call_operand.hbm [shape: f32[2,8,256], index: 5, kind: output, shape index: {}]
  %s6 = sld [smem:[#allocation0]]
  $region34: #{tpu_custom_call.1} parent=0
    _
  %s8 = ssub.s32 1, %s6
  %s9 = scalar_select 0, %s8, %s6
  $region1: #{tpu_custom_call.1} parent=0
    #allocation2 [shape = 'u8[16384]{0}', space=vmem, size = 0x4000, scoped, tag = 'input window, operand 0, single buffered']
    #allocation3 [shape = 's32[1]{0}', space=sflag, size = 0x4, scoped, tag = 'scoped memory for tpu_custom_call.1']
    #allocation4 [shape = 's32[1]{0}', space=sflag, size = 0x4, scoped, tag = 'scoped memory for tpu_custom_call.1']
    #allocation5 [shape = 'u8[16384]{0}', space=vmem, size = 0x4000, scoped, tag = 'output window, operand 0, single buffered']
    %10 = vsyncpa [#allocation3], 0
    %11 = vsyncpa [#allocation4], 0
    // Predicated region
    $region2: #{tpu_custom_call.1} parent=1 // pred_check
      _
    $region3: #{tpu_custom_call.1} parent=1 // pred_check_branch
      %13 = sbr.rel (0) target = $region5
    $region4: #{tpu_custom_call.1} parent=1 // pred_region
      %s15 = ssub.s32 512, 512
      %16 = vsyncadd [#allocation3], %s15
      %s17 = sshll.u32 [#allocation2], 4
      %s18 = int_to_ptr.vmem [resolvable:$true] %s17
      %23 = dma.hbm_to_vmem [thread:$0]  %s0, 512, %s18, [#allocation3], 256, 256, 16
    $region5: #{tpu_custom_call.1} parent=1 // pred_fallthru
      _
    // Predicated region
    $region6: #{tpu_custom_call.1} parent=1 // pred_check
      _
    $region7: #{tpu_custom_call.1} parent=1 // pred_check_branch
      %25 = sbr.rel (0) target = $region9
    $region8: #{tpu_custom_call.1} parent=1 // pred_region
      _
    $region9: #{tpu_custom_call.1} parent=1 // pred_fallthru
      _
    // Predicated region
    $region10: #{tpu_custom_call.1} parent=1 // pred_check
      _
    $region11: #{tpu_custom_call.1} parent=1 // pred_check_branch
      %27 = sbr.rel (0) target = $region13
    $region12: #{tpu_custom_call.1} parent=1 // pred_region
      _
    $region13: #{tpu_custom_call.1} parent=1 // pred_fallthru
      _
    // Predicated region
    $region14: #{tpu_custom_call.1} parent=1 // pred_check
      _
    $region15: #{tpu_custom_call.1} parent=1 // pred_check_branch
      %29 = sbr.rel (0) target = $region17
    $region16: #{tpu_custom_call.1} parent=1 // pred_region
      _
    $region17: #{tpu_custom_call.1} parent=1 // pred_fallthru
      _
    // Predicated region
    $region18: #{tpu_custom_call.1} parent=1 // pred_check
      _
    $region19: #{tpu_custom_call.1} parent=1 // pred_check_branch
      %31 = sbr.rel (0) target = $region21
    $region20: #{tpu_custom_call.1} parent=1 // pred_region
      _
    $region21: #{tpu_custom_call.1} parent=1 // pred_fallthru
      _
    // Predicated region
    $region22: #{tpu_custom_call.1} parent=1 // pred_check
      _
    $region23: #{tpu_custom_call.1} parent=1 // pred_check_branch
      %33 = sbr.rel (0) target = $region25
    $region24: #{tpu_custom_call.1} parent=1 // pred_region
      %34 = dma.done [#allocation3], 512
    $region25: #{tpu_custom_call.1} parent=1 // pred_fallthru
      _
    %v35 = vld [vmem:[#allocation2] sm:$0xff]
    %v36 = vld [vmem:[#allocation2 + $0x8] sm:$0xff]
    %v37 = vld [vmem:[#allocation2 + $0x10] sm:$0xff]
    %v38 = vld [vmem:[#allocation2 + $0x18] sm:$0xff]
    %v39 = vadd.f32 %v35, %v36
    %40 = vadd.xlane.f32.xlu0 %v39
    %v41 = vpop.xlane.xlu0 %40
    %v42 = vadd.f32 %v37, %v38
    %43 = vadd.xlane.f32.xlu0 %v42
    %v44 = vpop.xlane.xlu0 %43
    %v45 = vmul.f32 %v41, 0.00390625
    %v46 = vmul.f32 %v44, 0.00390625
    %v47 = vld [vmem:[%s1] sm:$0x3]
    %v48 = vld [vmem:[%s3] sm:$0xff]
    %v49 = vld [vmem:[%s2] sm:$0x1]
    %v51 = vlaneseq
    %v52 = vshrl.u32 %v51, 7
    %v53 = vsub.s32 0, %v52
    %v54 = vrot.slane %v49, %v53
    %v58 = vlaneseq
    %v59 = vand.u32 %v58, 127
    %v60 = vlaneseq
    %v61 = vshrl.u32 %v60, 7
    %v62 = vsub.s32 %v59, %v61
    %v63 = vrot.slane %v45, %v62
    %v64 = vlaneseq
    %v65 = vshrl.u32 %v64, 7
    %v66 = vsub.s32 %v59, %v65
    %v67 = vrot.slane %v46, %v66
    %vm68 = vcmask 1041409
    %v69 = vsel %vm68, %v67, %v63
    %vm70 = vcmask 64512
    %v71 = vsel %vm70, %v69, 0
    %v74 = vsel %vm70, %v47, 0
    %76 = vmatprep.subr.mxu0 0.0
    %77 = vmatpush1.xpose.msra.mxu0 %v74
    %78 = vmatprep.subr.mxu0 0.0
    %79 = vmatpush1.xpose.msra.mxu0 0.0
    %80 = vmatprep.subr.mxu0 0.0
    %81 = vmatpush1.xpose.msra.mxu0 0.0
    %82 = vmatprep.subr.mxu0 0.0
    %83 = vmatpush1.xpose.msra.mxu0 0.0
    %84 = vmatprep.subr.mxu0 0.0
    %85 = vmatpush1.xpose.msra.mxu0 0.0
    %86 = vmatprep.subr.mxu0 0.0
    %87 = vmatpush1.xpose.msra.mxu0 0.0
    %88 = vmatprep.subr.mxu0 0.0
    %89 = vmatpush1.xpose.msra.mxu0 0.0
    %90 = vmatprep.subr.mxu0 0.0
    %91 = vmatpush1.xpose.msra.mxu0 0.0
    %92 = vmatprep.subr.mxu0 0.0
    %93 = vmatpush1.xpose.msra.mxu0 0.0
    %94 = vmatprep.subr.mxu0 0.0
    %95 = vmatpush1.xpose.msra.mxu0 0.0
    %96 = vmatprep.subr.mxu0 0.0
    %97 = vmatpush1.xpose.msra.mxu0 0.0
    %98 = vmatprep.subr.mxu0 0.0
    %99 = vmatpush1.xpose.msra.mxu0 0.0
    %100 = vmatprep.subr.mxu0 0.0
    %101 = vmatpush1.xpose.msra.mxu0 0.0
    %102 = vmatprep.subr.mxu0 0.0
    %103 = vmatpush1.xpose.msra.mxu0 0.0
    %104 = vmatprep.subr.mxu0 0.0
    %105 = vmatpush1.xpose.msra.mxu0 0.0
    %106 = vmatprep.subr.mxu0 0.0
    %107 = vmatpush1.xpose.msra.mxu0 0.0
    %108 = vmatprep.subr.mxu0 0.0
    %109 = vmatpush1.xpose.msra.mxu0 0.0
    %110 = vmatprep.subr.mxu0 0.0
    %111 = vmatpush1.xpose.msra.mxu0 0.0
    %112 = vmatprep.subr.mxu0 0.0
    %113 = vmatpush1.xpose.msra.mxu0 0.0
    %114 = vmatprep.subr.mxu0 0.0
    %115 = vmatpush1.xpose.msra.mxu0 0.0
    %116 = vmatprep.subr.mxu0 0.0
    %117 = vmatpush1.xpose.msra.mxu0 0.0
    %118 = vmatprep.subr.mxu0 0.0
    %119 = vmatpush1.xpose.msra.mxu0 0.0
    %120 = vmatprep.subr.mxu0 0.0
    %121 = vmatpush1.xpose.msra.mxu0 0.0
    %122 = vmatprep.subr.mxu0 0.0
    %123 = vmatpush1.xpose.msra.mxu0 0.0
    %124 = vmatprep.subr.mxu0 0.0
    %125 = vmatpush1.xpose.msra.mxu0 0.0
    %126 = vmatprep.subr.mxu0 0.0
    %127 = vmatpush1.xpose.msra.mxu0 0.0
    %128 = vmatprep.subr.mxu0 0.0
    %129 = vmatpush1.xpose.msra.mxu0 0.0
    %130 = vmatprep.subr.mxu0 0.0
    %131 = vmatpush1.xpose.msra.mxu0 0.0
    %132 = vmatprep.subr.mxu0 0.0
    %133 = vmatpush1.xpose.msra.mxu0 0.0
    %134 = vmatprep.subr.mxu0 0.0
    %135 = vmatpush1.xpose.msra.mxu0 0.0
    %136 = vmatprep.subr.mxu0 0.0
    %137 = vmatpush1.xpose.msra.mxu0 0.0
    %138 = vmatprep.subr.mxu0 0.0
    %139 = vmatpush1.xpose.msra.mxu0 0.0
    %140 = vmatprep.mubr.f32.mxu0 0.0
    %141 = vmatmul.mubr.f32.gmra.mrb[0].mxu0 %v71
    %v142 = vpop.f32.mrb[0].mxu0
    %v143 = vadd.f32 %v54, %v142
    %v144 = vpop.f32.mrb[0].mxu0
    %145 = vdwg.mxu0
    %v146 = vmax.f32 %v143, 0.0
    %v147 = vld [vmem:[%s4] sm:$0x1]
    %v149 = vlaneseq
    %v150 = vshrl.u32 %v149, 7
    %v151 = vsub.s32 0, %v150
    %v152 = vrot.slane %v147, %v151
    %vm154 = vcmask 15360
    %v156 = vsel %vm154, %v146, 0
    %v159 = vsel %vm154, %v48, 0
    %161 = vmatprep.subr.mxu0 0.0
    %162 = vmatpush1.xpose.msra.mxu0 %v159
    %163 = vmatprep.subr.mxu0 0.0
    %164 = vmatpush1.xpose.msra.mxu0 0.0
    %165 = vmatprep.subr.mxu0 0.0
    %166 = vmatpush1.xpose.msra.mxu0 0.0
    %167 = vmatprep.subr.mxu0 0.0
    %168 = vmatpush1.xpose.msra.mxu0 0.0
    %169 = vmatprep.subr.mxu0 0.0
    %170 = vmatpush1.xpose.msra.mxu0 0.0
    %171 = vmatprep.subr.mxu0 0.0
    %172 = vmatpush1.xpose.msra.mxu0 0.0
    %173 = vmatprep.subr.mxu0 0.0
    %174 = vmatpush1.xpose.msra.mxu0 0.0
    %175 = vmatprep.subr.mxu0 0.0
    %176 = vmatpush1.xpose.msra.mxu0 0.0
    %177 = vmatprep.subr.mxu0 0.0
    %178 = vmatpush1.xpose.msra.mxu0 0.0
    %179 = vmatprep.subr.mxu0 0.0
    %180 = vmatpush1.xpose.msra.mxu0 0.0
    %181 = vmatprep.subr.mxu0 0.0
    %182 = vmatpush1.xpose.msra.mxu0 0.0
    %183 = vmatprep.subr.mxu0 0.0
    %184 = vmatpush1.xpose.msra.mxu0 0.0
    %185 = vmatprep.subr.mxu0 0.0
    %186 = vmatpush1.xpose.msra.mxu0 0.0
    %187 = vmatprep.subr.mxu0 0.0
    %188 = vmatpush1.xpose.msra.mxu0 0.0
    %189 = vmatprep.subr.mxu0 0.0
    %190 = vmatpush1.xpose.msra.mxu0 0.0
    %191 = vmatprep.subr.mxu0 0.0
    %192 = vmatpush1.xpose.msra.mxu0 0.0
    %193 = vmatprep.subr.mxu0 0.0
    %194 = vmatpush1.xpose.msra.mxu0 0.0
    %195 = vmatprep.subr.mxu0 0.0
    %196 = vmatpush1.xpose.msra.mxu0 0.0
    %197 = vmatprep.subr.mxu0 0.0
    %198 = vmatpush1.xpose.msra.mxu0 0.0
    %199 = vmatprep.subr.mxu0 0.0
    %200 = vmatpush1.xpose.msra.mxu0 0.0
    %201 = vmatprep.subr.mxu0 0.0
    %202 = vmatpush1.xpose.msra.mxu0 0.0
    %203 = vmatprep.subr.mxu0 0.0
    %204 = vmatpush1.xpose.msra.mxu0 0.0
    %205 = vmatprep.subr.mxu0 0.0
    %206 = vmatpush1.xpose.msra.mxu0 0.0
    %207 = vmatprep.subr.mxu0 0.0
    %208 = vmatpush1.xpose.msra.mxu0 0.0
    %209 = vmatprep.subr.mxu0 0.0
    %210 = vmatpush1.xpose.msra.mxu0 0.0
    %211 = vmatprep.subr.mxu0 0.0
    %212 = vmatpush1.xpose.msra.mxu0 0.0
    %213 = vmatprep.subr.mxu0 0.0
    %214 = vmatpush1.xpose.msra.mxu0 0.0
    %215 = vmatprep.subr.mxu0 0.0
    %216 = vmatpush1.xpose.msra.mxu0 0.0
    %217 = vmatprep.subr.mxu0 0.0
    %218 = vmatpush1.xpose.msra.mxu0 0.0
    %219 = vmatprep.subr.mxu0 0.0
    %220 = vmatpush1.xpose.msra.mxu0 0.0
    %221 = vmatprep.subr.mxu0 0.0
    %222 = vmatpush1.xpose.msra.mxu0 0.0
    %223 = vmatprep.subr.mxu0 0.0
    %224 = vmatpush1.xpose.msra.mxu0 0.0
    %225 = vmatprep.mubr.f32.mxu0 0.0
    %226 = vmatmul.mubr.f32.gmra.mrb[0].mxu0 %v156
    %v227 = vpop.f32.mrb[0].mxu0
    %v228 = vadd.f32 %v152, %v227
    %v229 = vpop.f32.mrb[0].mxu0
    %230 = vdwg.mxu0
    %v231 = vadd.f32 %v228, 3.0
    %v232 = vmax.f32 %v231, 0.0
    %v233 = vmin.f32 %v232, 6.0
    %v234 = vmul.f32 %v233, 0.16666667
    %v235 = vlaneseq
    %v236 = vshrl.u32 %v235, 7
    %v237 = vsub.s32 0, %v236
    %v238 = vrot.slane %v234, %v237
    %240 = vbcast.lane.b32.xlu0 %v238, 256
    %v241 = vpop.permute.xlu0 %240
    %v242 = vlaneseq
    %v243 = vshrl.u32 %v242, 7
    %v244 = vsub.s32 1, %v243
    %v245 = vrot.slane %v234, %v244
    %247 = vbcast.lane.b32.xlu0 %v245, 256
    %v248 = vpop.permute.xlu0 %247
    %v249 = vmul.f32 %v35, %v241
    %v250 = vmul.f32 %v36, %v241
    %v251 = vmul.f32 %v37, %v248
    %v252 = vmul.f32 %v38, %v248
    %253 = vst [vmem:[#allocation5] sm:$0xff] %v249
    %254 = vst [vmem:[#allocation5 + $0x8] sm:$0xff] %v250
    %255 = vst [vmem:[#allocation5 + $0x10] sm:$0xff] %v251
    %256 = vst [vmem:[#allocation5 + $0x18] sm:$0xff] %v252
    // Predicated region
    $region26: #{tpu_custom_call.1} parent=1 // pred_check
      _
    $region27: #{tpu_custom_call.1} parent=1 // pred_check_branch
      %258 = sbr.rel (0) target = $region29
    $region28: #{tpu_custom_call.1} parent=1 // pred_region
      %s260 = ssub.s32 512, 512
      %261 = vsyncadd [#allocation4], %s260
      %s262 = sshll.u32 [#allocation5], 4
      %s263 = int_to_ptr.vmem [resolvable:$true] %s262
      %268 = dma.vmem_to_hbm [thread:$0]  %s263, 512, %s5, [#allocation4], 256, 256, 16
    $region29: #{tpu_custom_call.1} parent=1 // pred_fallthru
      _
    // Predicated region
    $region30: #{tpu_custom_call.1} parent=1 // pred_check
      _
    $region31: #{tpu_custom_call.1} parent=1 // pred_check_branch
      %270 = sbr.rel (0) target = $region33
    $region32: #{tpu_custom_call.1} parent=1 // pred_region
      %271 = dma.done [#allocation4], 512
    $region33: #{tpu_custom_call.1} parent=1 // pred_fallthru
      _
    %272 = vsyncpa [#allocation3], 1
    %273 = vsyncpa [#allocation4], 1

</llo_original>
